<compile_context>
chip_gen: v5e
topology: v5e:2x2
jax: 0.10.0
libtpu: 0.0.40
codegen_flags: <defaults>
</compile_context>

<pallas_src>
import functools

import jax
import jax.numpy as jnp
from jax import lax
from jax.experimental import pallas as pl
from jax.experimental.pallas import tpu as pltpu

_CHUNK = 256          # rows of the batch tile processed per inner iteration
_LEAKY_SLOPE = 0.01   # PyTorch F.leaky_relu default negative_slope


def _round_up(n: int, m: int) -> int:
    return ((n + m - 1) // m) * m


def _valuenet_kernel(x_ref, w1_ref, b1_ref, w2_ref, b2_ref, o_ref, *,
                     chunk, n_chunks):
    """One batch tile: o = leaky_relu(x @ w1 + b1) @ w2 + b2."""
    w1 = w1_ref[...]     # [D, H]   weights stay VMEM-resident across the grid
    b1 = b1_ref[...]     # [1, H]
    w2 = w2_ref[...]     # [1, H]   value-head column laid out as a row
    b2 = b2_ref[...]     # [1, 1]

    def body(c, carry):
        r = pl.multiple_of(c * chunk, chunk)
        xc = x_ref[pl.ds(r, chunk), :]                        # [chunk, D]
        h = jnp.dot(xc, w1, preferred_element_type=jnp.float32,
                    precision=lax.Precision.HIGHEST)          # MXU, [chunk, H]
        h = h + b1
        h = jnp.maximum(h, _LEAKY_SLOPE * h)                  # leaky_relu(0.01)
        # Value head: VPU multiply + XLU lane-reduce (no second N=1 MXU pass).
        v = jnp.sum(h * w2, axis=-1, keepdims=True) + b2      # [chunk, 1]
        o_ref[pl.ds(r, chunk), :] = v.astype(o_ref.dtype)
        return carry

    lax.fori_loop(0, n_chunks, body, 0, unroll=True)


def prepare_valuenet_params(w1, b1, w2, b2):
    """Pack PyTorch-layout weights for the kernel. Call once at init."""
    w1 = jnp.asarray(w1, jnp.float32)                # [D, H]
    b1 = jnp.asarray(b1, jnp.float32).reshape(-1)    # [H]
    w2 = jnp.asarray(w2, jnp.float32).reshape(-1)    # [H] (column of [H, 1])
    b2 = jnp.asarray(b2, jnp.float32).reshape(1, 1)  # [1, 1]
    h = w1.shape[1]
    hp = _round_up(h, 8)   # f32 sublane quantum; H=80 is already aligned
    if hp != h:            # exact padding: padded hidden units have zero w2
        w1 = jnp.pad(w1, ((0, 0), (0, hp - h)))
        b1 = jnp.pad(b1, (0, hp - h))
        w2 = jnp.pad(w2, (0, hp - h))
    return w1, b1.reshape(1, hp), w2.reshape(1, hp), b2


def valuenet_ac3_forward(x, params, *, block_b=2048):
    """state_value = value_head(leaky_relu(affine1(x))); returns [B, 1] f32.

    x      : [B, D] float32
    params : output of prepare_valuenet_params (packed once at init)
    block_b: target batch tile (rounded to the 256-row inner chunk).
    """
    w1, b1, w2, b2 = params
    x = jnp.asarray(x, jnp.float32)
    B, D = x.shape
    HP = w1.shape[1]

    # Batch tile: multiple of the inner chunk, large enough to amortize the
    # per-grid-step pipeline overhead, capped so the grid keeps >=2 steps when
    # the batch allows it (v7x has 2 TensorCores; "parallel" only shards the
    # batch axis across them if there is more than one grid step).
    half = _round_up(pl.cdiv(B, 2), _CHUNK) if B > _CHUNK else _CHUNK
    TB = max(_CHUNK, min(_round_up(block_b, _CHUNK), half))
    BP = _round_up(B, TB)
    if BP != B:
        x = jnp.pad(x, ((0, BP - B), (0, 0)))   # tail padding only when needed

    kernel = functools.partial(_valuenet_kernel, chunk=_CHUNK,
                               n_chunks=TB // _CHUNK)

    cost = pl.CostEstimate(
        flops=2 * BP * D * HP + 4 * BP * HP,
        transcendentals=0,
        bytes_accessed=(BP * D + D * HP + 2 * HP + 1 + BP) * 4,
    )

    out = pl.pallas_call(
        kernel,
        out_shape=jax.ShapeDtypeStruct((BP, 1), jnp.float32),
        grid_spec=pltpu.PrefetchScalarGridSpec(
            num_scalar_prefetch=0,
            grid=(BP // TB,),
            in_specs=[
                # x: one contiguous [TB, D] batch tile per grid step (pipelined).
                pl.BlockSpec((TB, D), lambda i: (i, 0)),
                # Weights / biases: constant index map -> DMA'd once, resident.
                pl.BlockSpec((D, HP), lambda i: (0, 0)),
                pl.BlockSpec((1, HP), lambda i: (0, 0)),
                pl.BlockSpec((1, HP), lambda i: (0, 0)),
                pl.BlockSpec((1, 1), lambda i: (0, 0)),
            ],
            out_specs=pl.BlockSpec((TB, 1), lambda i: (i, 0)),
        ),
        compiler_params=pltpu.CompilerParams(
            dimension_semantics=("parallel",),
            vmem_limit_bytes=32 * 1024 * 1024,
        ),
        cost_estimate=cost,
    )(x, w1, b1, w2, b2)

    # Drop batch padding; output already in the module's [B, 1] layout.
    return out[:B]


def init_params(key, input_size, hidden_size=80):
    """PyTorch-style Linear init: U(-1/sqrt(fan_in), 1/sqrt(fan_in))."""
    k1, k2, k3, k4 = jax.random.split(key, 4)
    bound1 = 1.0 / jnp.sqrt(float(input_size))
    bound2 = 1.0 / jnp.sqrt(float(hidden_size))
    w1 = jax.random.uniform(k1, (input_size, hidden_size), jnp.float32,
                            -bound1, bound1)
    b1 = jax.random.uniform(k2, (hidden_size,), jnp.float32, -bound1, bound1)
    w2 = jax.random.uniform(k3, (hidden_size, 1), jnp.float32, -bound2, bound2)
    b2 = jax.random.uniform(k4, (1,), jnp.float32, -bound2, bound2)
    return w1, b1, w2, b2


if __name__ == "__main__":
    key = jax.random.PRNGKey(0)
    k_x1, k_x2, k_p = jax.random.split(key, 3)

    input_size = 8       # small state vector
    hidden_size = 80     # module default

    w1, b1, w2, b2 = init_params(k_p, input_size, hidden_size)
    params = prepare_valuenet_params(w1, b1, w2, b2)   # packed once, at init

    def ref_forward(x):
        h = jnp.dot(x, w1, precision=lax.Precision.HIGHEST) + b1
        h = jnp.where(h > 0, h, _LEAKY_SLOPE * h)
        return jnp.dot(h, w2, precision=lax.Precision.HIGHEST) + b2

    # 1) Small batch: single grid step, batch padded to one 256-row tile.
    x_small = jax.random.normal(k_x1, (4, input_size), jnp.float32)
    v_small = jax.block_until_ready(valuenet_ac3_forward(x_small, params))
    assert v_small.shape == (4, 1)
    assert jnp.allclose(v_small, ref_forward(x_small), atol=5e-3, rtol=5e-3)

    # 2) Batch not a multiple of the tile: exercises the multi-step grid,
    #    resident weights, tail padding and the inner chunk loop.
    x_big = jax.random.normal(k_x2, (300, input_size), jnp.float32)
    v_big = jax.block_until_ready(valuenet_ac3_forward(x_big, params))
    assert v_big.shape == (300, 1)
    assert jnp.allclose(v_big, ref_forward(x_big), atol=5e-3, rtol=5e-3)

    print("KERNEL_OK")
</pallas_src>

<mosaic_0001>
module attributes {stable_mosaic.version = 11 : i64} {
  func.func @_valuenet_kernel(%arg0: i32, %arg1: memref<256x8xf32, #tpu.memory_space<vmem>>, %arg2: memref<8x80xf32, #tpu.memory_space<vmem>>, %arg3: memref<1x80xf32, #tpu.memory_space<vmem>>, %arg4: memref<1x80xf32, #tpu.memory_space<vmem>>, %arg5: memref<1x1xf32, #tpu.memory_space<vmem>>, %arg6: memref<256x1xf32, #tpu.memory_space<vmem>>) attributes {dimension_semantics = [#tpu.dimension_semantics<parallel>], iteration_bounds = array<i64: 1>, scalar_prefetch = 0 : i64, scratch_operands = 0 : i64, tpu.core_type = #tpu.core_type<tc>, window_params = [{transform_indices = @transform_0, window_bounds = array<i64: 256, 8>}, {pipeline_mode = #tpu.pipeline_mode<synchronous>, transform_indices = @transform_1, window_bounds = array<i64: 8, 80>}, {pipeline_mode = #tpu.pipeline_mode<synchronous>, transform_indices = @transform_2, window_bounds = array<i64: 1, 80>}, {pipeline_mode = #tpu.pipeline_mode<synchronous>, transform_indices = @transform_3, window_bounds = array<i64: 1, 80>}, {pipeline_mode = #tpu.pipeline_mode<synchronous>, transform_indices = @transform_4, window_bounds = array<i64: 1, 1>}, {transform_indices = @transform_5, window_bounds = array<i64: 256, 1>}]} {
    %c0 = arith.constant 0 : index
    %c0_0 = arith.constant 0 : index
    %0 = vector.load %arg2[%c0, %c0_0] : memref<8x80xf32, #tpu.memory_space<vmem>>, vector<8x80xf32>
    %c0_1 = arith.constant 0 : index
    %c0_2 = arith.constant 0 : index
    %1 = vector.load %arg3[%c0_1, %c0_2] : memref<1x80xf32, #tpu.memory_space<vmem>>, vector<1x80xf32>
    %c0_3 = arith.constant 0 : index
    %c0_4 = arith.constant 0 : index
    %2 = vector.load %arg4[%c0_3, %c0_4] : memref<1x80xf32, #tpu.memory_space<vmem>>, vector<1x80xf32>
    %c0_5 = arith.constant 0 : index
    %c0_6 = arith.constant 0 : index
    %3 = vector.load %arg5[%c0_5, %c0_6] : memref<1x1xf32, #tpu.memory_space<vmem>>, vector<1x1xf32>
    %c0_i32 = arith.constant 0 : i32
    %c256_i32 = arith.constant 256 : i32
    %4 = arith.muli %c0_i32, %c256_i32 : i32
    %5 = tpu.assume_multiple %4, 256 : i32
    %6 = arith.index_cast %5 : i32 to index
    %c0_7 = arith.constant 0 : index
    %7 = vector.load %arg1[%6, %c0_7] : memref<256x8xf32, #tpu.memory_space<vmem>>, vector<256x8xf32>
    %cst = arith.constant dense<0.000000e+00> : vector<256x80xf32>
    %8 = tpu.matmul %7, %0, %cst {dimension_numbers = #tpu.dot_dimension_numbers<[1], [0], [0], [1], [0, 0, 1, 1], [], []>, precision = #tpu.contract_precision<fp32>} : vector<256x8xf32>, vector<8x80xf32>, vector<256x80xf32> -> vector<256x80xf32>
    %9 = vector.broadcast %1 : vector<1x80xf32> to vector<256x80xf32>
    %10 = arith.addf %8, %9 : vector<256x80xf32>
    %cst_8 = arith.constant 0.00999999977 : f32
    %11 = vector.broadcast %cst_8 : f32 to vector<256x80xf32>
    %12 = arith.mulf %11, %10 : vector<256x80xf32>
    %13 = arith.maximumf %10, %12 : vector<256x80xf32>
    %14 = vector.broadcast %2 : vector<1x80xf32> to vector<256x80xf32>
    %15 = arith.mulf %13, %14 : vector<256x80xf32>
    %cst_9 = arith.constant dense<0.000000e+00> : vector<256xf32>
    %16 = vector.multi_reduction <add>, %15, %cst_9 [1] : vector<256x80xf32> to vector<256xf32>
    %17 = vector.shape_cast %16 : vector<256xf32> to vector<256x1xf32>
    %18 = vector.broadcast %3 : vector<1x1xf32> to vector<256x1xf32>
    %19 = arith.addf %17, %18 : vector<256x1xf32>
    %20 = arith.index_cast %5 : i32 to index
    %c0_10 = arith.constant 0 : index
    %21 = vector.load %arg6[%20, %c0_10] : memref<256x1xf32, #tpu.memory_space<vmem>>, vector<256x1xf32>
    tpu.vector_store %arg6[%20, %c0_10], %19 {strides = array<i32>} : memref<256x1xf32, #tpu.memory_space<vmem>>, vector<256x1xf32>,
    %c1_i32 = arith.constant 1 : i32
    return
  }
  func.func @transform_0(%arg0: i32) -> (i32, i32) {
    %c0_i32 = arith.constant 0 : i32
    %c0_i32_0 = arith.constant 0 : i32
    return %arg0, %c0_i32 : i32, i32
  }
  func.func @transform_1(%arg0: i32) -> (i32, i32) {
    %c0_i32 = arith.constant 0 : i32
    %c0_i32_0 = arith.constant 0 : i32
    %c0_i32_1 = arith.constant 0 : i32
    return %c0_i32, %c0_i32_0 : i32, i32
  }
  func.func @transform_2(%arg0: i32) -> (i32, i32) {
    %c0_i32 = arith.constant 0 : i32
    %c0_i32_0 = arith.constant 0 : i32
    %c0_i32_1 = arith.constant 0 : i32
    return %c0_i32, %c0_i32_0 : i32, i32
  }
  func.func @transform_3(%arg0: i32) -> (i32, i32) {
    %c0_i32 = arith.constant 0 : i32
    %c0_i32_0 = arith.constant 0 : i32
    %c0_i32_1 = arith.constant 0 : i32
    return %c0_i32, %c0_i32_0 : i32, i32
  }
  func.func @transform_4(%arg0: i32) -> (i32, i32) {
    %c0_i32 = arith.constant 0 : i32
    %c0_i32_0 = arith.constant 0 : i32
    %c0_i32_1 = arith.constant 0 : i32
    return %c0_i32, %c0_i32_0 : i32, i32
  }
  func.func @transform_5(%arg0: i32) -> (i32, i32) {
    %c0_i32 = arith.constant 0 : i32
    %c0_i32_0 = arith.constant 0 : i32
    return %arg0, %c0_i32 : i32, i32
  }
}

</mosaic_0001>

<llo_original>
// kernel: tpu_custom_call.1
$region0: #{tpu_custom_call.1}
  #allocation0 [shape = 'u32[]', space=smem, size = 0x4, offset = 0x4, fixed_abs, tag = 'smem constant byte address 0x4 - core index']
  #allocation1 [shape = 'u32[72,128]{1,0:T(1,128)}', space=vmem, size = 0x9000, scoped, tag = 'internal scratch']
  #allocation2 [shape = 'f32[1,1]{1,0:T(1,128)S(1)}', space=vmem, size = 0x200, scoped, tag = 'scoped memory for tpu_custom_call.1']
  %s0 = inlined_call_operand.vmem [shape: f32[256,8], index: 0, kind: input, shape index: {}]
  %s1 = inlined_call_operand.vmem [shape: f32[8,80], index: 1, kind: input, shape index: {}]
  %s2 = inlined_call_operand.vmem [shape: f32[1,80], index: 2, kind: input, shape index: {}]
  %s3 = inlined_call_operand.vmem [shape: f32[1,80], index: 3, kind: input, shape index: {}]
  %s4 = inlined_call_operand.<no memory space> [shape: f32[1,1], index: 4, kind: input, shape index: {}]
  %s5 = inlined_call_operand.vmem [shape: f32[256,1], index: 5, kind: output, shape index: {}]
  %s6 = sld [smem:[#allocation0]]
  $region30: #{tpu_custom_call.1} parent=0
    _
  %s8 = ssub.s32 1, %s6
  %s9 = scalar_select 0, %s8, %s6
  %v10 = vstv %s4
  %11 = vst [vmem:[#allocation2] sm:$0x1] %v10
  // Predicated region
  $region2: #{tpu_custom_call.1} parent=0 // pred_check
    _
  $region3: #{tpu_custom_call.1} parent=0 // pred_check_branch
    %13 = sbr.rel (0) target = $region5
  $region4: #{tpu_custom_call.1} parent=0 // pred_region
    _
  $region5: #{tpu_custom_call.1} parent=0 // pred_fallthru
    _
  // Predicated region
  $region6: #{tpu_custom_call.1} parent=0 // pred_check
    _
  $region7: #{tpu_custom_call.1} parent=0 // pred_check_branch
    %15 = sbr.rel (0) target = $region9
  $region8: #{tpu_custom_call.1} parent=0 // pred_region
    _
  $region9: #{tpu_custom_call.1} parent=0 // pred_fallthru
    _
  // Predicated region
  $region10: #{tpu_custom_call.1} parent=0 // pred_check
    _
  $region11: #{tpu_custom_call.1} parent=0 // pred_check_branch
    %17 = sbr.rel (0) target = $region13
  $region12: #{tpu_custom_call.1} parent=0 // pred_region
    _
  $region13: #{tpu_custom_call.1} parent=0 // pred_fallthru
    _
  // Predicated region
  $region14: #{tpu_custom_call.1} parent=0 // pred_check
    _
  $region15: #{tpu_custom_call.1} parent=0 // pred_check_branch
    %19 = sbr.rel (0) target = $region17
  $region16: #{tpu_custom_call.1} parent=0 // pred_region
    _
  $region17: #{tpu_custom_call.1} parent=0 // pred_fallthru
    _
  // Predicated region
  $region18: #{tpu_custom_call.1} parent=0 // pred_check
    _
  $region19: #{tpu_custom_call.1} parent=0 // pred_check_branch
    %21 = sbr.rel (0) target = $region21
  $region20: #{tpu_custom_call.1} parent=0 // pred_region
    _
  $region21: #{tpu_custom_call.1} parent=0 // pred_fallthru
    _
  %v22 = vld [vmem:[%s1] sm:$0xff]
  %v23 = vld [vmem:[%s2] sm:$0x1]
  %v24 = vld [vmem:[%s3] sm:$0x1]
  %v25 = vld [vmem:[#allocation2] sm:$0x1]
  %v26 = vld [vmem:[%s0] sm:$0xff]
  %v27 = vld [vmem:[%s0 + $0x8] sm:$0xff]
  %v28 = vld [vmem:[%s0 + $0x10] sm:$0xff]
  %v29 = vld [vmem:[%s0 + $0x18] sm:$0xff]
  %v30 = vld [vmem:[%s0 + $0x20] sm:$0xff]
  %v31 = vld [vmem:[%s0 + $0x28] sm:$0xff]
  %v32 = vld [vmem:[%s0 + $0x30] sm:$0xff]
  %v33 = vld [vmem:[%s0 + $0x38] sm:$0xff]
  %v34 = vld [vmem:[%s0 + $0x40] sm:$0xff]
  %v35 = vld [vmem:[%s0 + $0x48] sm:$0xff]
  %v36 = vld [vmem:[%s0 + $0x50] sm:$0xff]
  %v37 = vld [vmem:[%s0 + $0x58] sm:$0xff]
  %v38 = vld [vmem:[%s0 + $0x60] sm:$0xff]
  %v39 = vld [vmem:[%s0 + $0x68] sm:$0xff]
  %v40 = vld [vmem:[%s0 + $0x70] sm:$0xff]
  %v41 = vld [vmem:[%s0 + $0x78] sm:$0xff]
  %v42 = vld [vmem:[%s0 + $0x80] sm:$0xff]
  %v43 = vld [vmem:[%s0 + $0x88] sm:$0xff]
  %v44 = vld [vmem:[%s0 + $0x90] sm:$0xff]
  %v45 = vld [vmem:[%s0 + $0x98] sm:$0xff]
  %v46 = vld [vmem:[%s0 + $0xa0] sm:$0xff]
  %v47 = vld [vmem:[%s0 + $0xa8] sm:$0xff]
  %v48 = vld [vmem:[%s0 + $0xb0] sm:$0xff]
  %v49 = vld [vmem:[%s0 + $0xb8] sm:$0xff]
  %v50 = vld [vmem:[%s0 + $0xc0] sm:$0xff]
  %v51 = vld [vmem:[%s0 + $0xc8] sm:$0xff]
  %v52 = vld [vmem:[%s0 + $0xd0] sm:$0xff]
  %v53 = vld [vmem:[%s0 + $0xd8] sm:$0xff]
  %v54 = vld [vmem:[%s0 + $0xe0] sm:$0xff]
  %v55 = vld [vmem:[%s0 + $0xe8] sm:$0xff]
  %v56 = vld [vmem:[%s0 + $0xf0] sm:$0xff]
  %v57 = vld [vmem:[%s0 + $0xf8] sm:$0xff]
  %v59 = vperm.slane %v23, 0
  %vm61 = vcmask 64512
  %v63 = vsel %vm61, %v26, 0
  %v66 = vsel %vm61, %v27, 0
  %v69 = vsel %vm61, %v28, 0
  %v72 = vsel %vm61, %v29, 0
  %v75 = vsel %vm61, %v30, 0
  %v78 = vsel %vm61, %v31, 0
  %v81 = vsel %vm61, %v32, 0
  %v84 = vsel %vm61, %v33, 0
  %v87 = vsel %vm61, %v34, 0
  %v90 = vsel %vm61, %v35, 0
  %v93 = vsel %vm61, %v36, 0
  %v96 = vsel %vm61, %v37, 0
  %v99 = vsel %vm61, %v38, 0
  %v102 = vsel %vm61, %v39, 0
  %v105 = vsel %vm61, %v40, 0
  %v108 = vsel %vm61, %v41, 0
  %v111 = vsel %vm61, %v42, 0
  %v114 = vsel %vm61, %v43, 0
  %v117 = vsel %vm61, %v44, 0
  %v120 = vsel %vm61, %v45, 0
  %v123 = vsel %vm61, %v46, 0
  %v126 = vsel %vm61, %v47, 0
  %v129 = vsel %vm61, %v48, 0
  %v132 = vsel %vm61, %v49, 0
  %v135 = vsel %vm61, %v50, 0
  %v138 = vsel %vm61, %v51, 0
  %v141 = vsel %vm61, %v52, 0
  %v144 = vsel %vm61, %v53, 0
  %v147 = vsel %vm61, %v54, 0
  %v150 = vsel %vm61, %v55, 0
  %v153 = vsel %vm61, %v56, 0
  %v156 = vsel %vm61, %v57, 0
  %158 = vmatpush.msra.mxu0 0.0
  %159 = vmatpush.msra.mxu0 0.0
  %160 = vmatpush.msra.mxu0 0.0
  %161 = vmatpush.msra.mxu0 0.0
  %162 = vmatpush.msra.mxu0 0.0
  %163 = vmatpush.msra.mxu0 0.0
  %164 = vmatpush.msra.mxu0 0.0
  %165 = vmatpush.msra.mxu0 0.0
  %166 = vmatpush.msra.mxu0 0.0
  %167 = vmatpush.msra.mxu0 0.0
  %168 = vmatpush.msra.mxu0 0.0
  %169 = vmatpush.msra.mxu0 0.0
  %170 = vmatpush.msra.mxu0 0.0
  %171 = vmatpush.msra.mxu0 0.0
  %172 = vmatpush.msra.mxu0 0.0
  %v173 = vand.u32 %v22, 4294901760
  %174 = vmatpush.msra.mxu0 %v173
  %v175 = vand.u32 %v63, 4294901760
  %v176 = vsub.f32 %v63, %v175
  %v177 = vand.u32 %v176, 4294901760
  %v178 = vsub.f32 %v176, %v177
  %v179 = vand.u32 %v178, 4294901760
  %180 = vmatmul.f32.gmra.mxu0 %v179
  %v181 = vpop.f32.mrf.mxu0
  %v182 = vadd.f32 %v59, %v181
  %v183 = vand.u32 %v66, 4294901760
  %v184 = vsub.f32 %v66, %v183
  %v185 = vand.u32 %v184, 4294901760
  %v186 = vsub.f32 %v184, %v185
  %v187 = vand.u32 %v186, 4294901760
  %188 = vmatmul.f32.gmra.mxu0 %v187
  %v189 = vpop.f32.mrf.mxu0
  %v190 = vadd.f32 %v59, %v189
  %v191 = vand.u32 %v69, 4294901760
  %v192 = vsub.f32 %v69, %v191
  %v193 = vand.u32 %v192, 4294901760
  %v194 = vsub.f32 %v192, %v193
  %v195 = vand.u32 %v194, 4294901760
  %196 = vmatmul.f32.gmra.mxu0 %v195
  %v197 = vpop.f32.mrf.mxu0
  %v198 = vadd.f32 %v59, %v197
  %v199 = vand.u32 %v72, 4294901760
  %v200 = vsub.f32 %v72, %v199
  %v201 = vand.u32 %v200, 4294901760
  %v202 = vsub.f32 %v200, %v201
  %v203 = vand.u32 %v202, 4294901760
  %204 = vmatmul.f32.gmra.mxu0 %v203
  %v205 = vpop.f32.mrf.mxu0
  %v206 = vadd.f32 %v59, %v205
  %v207 = vand.u32 %v75, 4294901760
  %v208 = vsub.f32 %v75, %v207
  %v209 = vand.u32 %v208, 4294901760
  %v210 = vsub.f32 %v208, %v209
  %v211 = vand.u32 %v210, 4294901760
  %212 = vmatmul.f32.gmra.mxu0 %v211
  %v213 = vpop.f32.mrf.mxu0
  %v214 = vadd.f32 %v59, %v213
  %v215 = vand.u32 %v78, 4294901760
  %v216 = vsub.f32 %v78, %v215
  %v217 = vand.u32 %v216, 4294901760
  %v218 = vsub.f32 %v216, %v217
  %v219 = vand.u32 %v218, 4294901760
  %220 = vmatmul.f32.gmra.mxu0 %v219
  %v221 = vpop.f32.mrf.mxu0
  %v222 = vadd.f32 %v59, %v221
  %v223 = vand.u32 %v81, 4294901760
  %v224 = vsub.f32 %v81, %v223
  %v225 = vand.u32 %v224, 4294901760
  %v226 = vsub.f32 %v224, %v225
  %v227 = vand.u32 %v226, 4294901760
  %228 = vmatmul.f32.gmra.mxu0 %v227
  %v229 = vpop.f32.mrf.mxu0
  %v230 = vadd.f32 %v59, %v229
  %v231 = vand.u32 %v84, 4294901760
  %v232 = vsub.f32 %v84, %v231
  %v233 = vand.u32 %v232, 4294901760
  %v234 = vsub.f32 %v232, %v233
  %v235 = vand.u32 %v234, 4294901760
  %236 = vmatmul.f32.gmra.mxu0 %v235
  %v237 = vpop.f32.mrf.mxu0
  %v238 = vadd.f32 %v59, %v237
  %v239 = vand.u32 %v87, 4294901760
  %v240 = vsub.f32 %v87, %v239
  %v241 = vand.u32 %v240, 4294901760
  %v242 = vsub.f32 %v240, %v241
  %v243 = vand.u32 %v242, 4294901760
  %244 = vmatmul.f32.gmra.mxu0 %v243
  %v245 = vpop.f32.mrf.mxu0
  %v246 = vadd.f32 %v59, %v245
  %v247 = vand.u32 %v90, 4294901760
  %v248 = vsub.f32 %v90, %v247
  %v249 = vand.u32 %v248, 4294901760
  %v250 = vsub.f32 %v248, %v249
  %v251 = vand.u32 %v250, 4294901760
  %252 = vmatmul.f32.gmra.mxu0 %v251
  %v253 = vpop.f32.mrf.mxu0
  %v254 = vadd.f32 %v59, %v253
  %v255 = vand.u32 %v93, 4294901760
  %v256 = vsub.f32 %v93, %v255
  %v257 = vand.u32 %v256, 4294901760
  %v258 = vsub.f32 %v256, %v257
  %v259 = vand.u32 %v258, 4294901760
  %260 = vmatmul.f32.gmra.mxu0 %v259
  %v261 = vpop.f32.mrf.mxu0
  %v262 = vadd.f32 %v59, %v261
  %v263 = vand.u32 %v96, 4294901760
  %v264 = vsub.f32 %v96, %v263
  %v265 = vand.u32 %v264, 4294901760
  %v266 = vsub.f32 %v264, %v265
  %v267 = vand.u32 %v266, 4294901760
  %268 = vmatmul.f32.gmra.mxu0 %v267
  %v269 = vpop.f32.mrf.mxu0
  %v270 = vadd.f32 %v59, %v269
  %v271 = vand.u32 %v99, 4294901760
  %v272 = vsub.f32 %v99, %v271
  %v273 = vand.u32 %v272, 4294901760
  %v274 = vsub.f32 %v272, %v273
  %v275 = vand.u32 %v274, 4294901760
  %276 = vmatmul.f32.gmra.mxu0 %v275
  %v277 = vpop.f32.mrf.mxu0
  %v278 = vadd.f32 %v59, %v277
  %v279 = vand.u32 %v102, 4294901760
  %v280 = vsub.f32 %v102, %v279
  %v281 = vand.u32 %v280, 4294901760
  %v282 = vsub.f32 %v280, %v281
  %v283 = vand.u32 %v282, 4294901760
  %284 = vmatmul.f32.gmra.mxu0 %v283
  %v285 = vpop.f32.mrf.mxu0
  %v286 = vadd.f32 %v59, %v285
  %v287 = vand.u32 %v105, 4294901760
  %v288 = vsub.f32 %v105, %v287
  %v289 = vand.u32 %v288, 4294901760
  %v290 = vsub.f32 %v288, %v289
  %v291 = vand.u32 %v290, 4294901760
  %292 = vmatmul.f32.gmra.mxu0 %v291
  %v293 = vpop.f32.mrf.mxu0
  %v294 = vadd.f32 %v59, %v293
  %v295 = vand.u32 %v108, 4294901760
  %v296 = vsub.f32 %v108, %v295
  %v297 = vand.u32 %v296, 4294901760
  %v298 = vsub.f32 %v296, %v297
  %v299 = vand.u32 %v298, 4294901760
  %300 = vmatmul.f32.gmra.mxu0 %v299
  %v301 = vpop.f32.mrf.mxu0
  %v302 = vadd.f32 %v59, %v301
  %v303 = vand.u32 %v111, 4294901760
  %v304 = vsub.f32 %v111, %v303
  %v305 = vand.u32 %v304, 4294901760
  %v306 = vsub.f32 %v304, %v305
  %v307 = vand.u32 %v306, 4294901760
  %308 = vmatmul.f32.gmra.mxu0 %v307
  %v309 = vpop.f32.mrf.mxu0
  %v310 = vadd.f32 %v59, %v309
  %v311 = vand.u32 %v114, 4294901760
  %v312 = vsub.f32 %v114, %v311
  %v313 = vand.u32 %v312, 4294901760
  %v314 = vsub.f32 %v312, %v313
  %v315 = vand.u32 %v314, 4294901760
  %316 = vmatmul.f32.gmra.mxu0 %v315
  %v317 = vpop.f32.mrf.mxu0
  %v318 = vadd.f32 %v59, %v317
  %v319 = vand.u32 %v117, 4294901760
  %v320 = vsub.f32 %v117, %v319
  %v321 = vand.u32 %v320, 4294901760
  %v322 = vsub.f32 %v320, %v321
  %v323 = vand.u32 %v322, 4294901760
  %324 = vmatmul.f32.gmra.mxu0 %v323
  %v325 = vpop.f32.mrf.mxu0
  %v326 = vadd.f32 %v59, %v325
  %v327 = vand.u32 %v120, 4294901760
  %v328 = vsub.f32 %v120, %v327
  %v329 = vand.u32 %v328, 4294901760
  %v330 = vsub.f32 %v328, %v329
  %v331 = vand.u32 %v330, 4294901760
  %332 = vmatmul.f32.gmra.mxu0 %v331
  %v333 = vpop.f32.mrf.mxu0
  %v334 = vadd.f32 %v59, %v333
  %v335 = vand.u32 %v123, 4294901760
  %v336 = vsub.f32 %v123, %v335
  %v337 = vand.u32 %v336, 4294901760
  %v338 = vsub.f32 %v336, %v337
  %v339 = vand.u32 %v338, 4294901760
  %340 = vmatmul.f32.gmra.mxu0 %v339
  %v341 = vpop.f32.mrf.mxu0
  %v342 = vadd.f32 %v59, %v341
  %v343 = vand.u32 %v126, 4294901760
  %v344 = vsub.f32 %v126, %v343
  %v345 = vand.u32 %v344, 4294901760
  %v346 = vsub.f32 %v344, %v345
  %v347 = vand.u32 %v346, 4294901760
  %348 = vmatmul.f32.gmra.mxu0 %v347
  %v349 = vpop.f32.mrf.mxu0
  %v350 = vadd.f32 %v59, %v349
  %v351 = vand.u32 %v129, 4294901760
  %v352 = vsub.f32 %v129, %v351
  %v353 = vand.u32 %v352, 4294901760
  %v354 = vsub.f32 %v352, %v353
  %v355 = vand.u32 %v354, 4294901760
  %356 = vmatmul.f32.gmra.mxu0 %v355
  %v357 = vpop.f32.mrf.mxu0
  %v358 = vadd.f32 %v59, %v357
  %v359 = vand.u32 %v132, 4294901760
  %v360 = vsub.f32 %v132, %v359
  %v361 = vand.u32 %v360, 4294901760
  %v362 = vsub.f32 %v360, %v361
  %v363 = vand.u32 %v362, 4294901760
  %364 = vmatmul.f32.gmra.mxu0 %v363
  %v365 = vpop.f32.mrf.mxu0
  %v366 = vadd.f32 %v59, %v365
  %v367 = vand.u32 %v135, 4294901760
  %v368 = vsub.f32 %v135, %v367
  %v369 = vand.u32 %v368, 4294901760
  %v370 = vsub.f32 %v368, %v369
  %v371 = vand.u32 %v370, 4294901760
  %372 = vmatmul.f32.gmra.mxu0 %v371
  %v373 = vpop.f32.mrf.mxu0
  %v374 = vadd.f32 %v59, %v373
  %v375 = vand.u32 %v138, 4294901760
  %v376 = vsub.f32 %v138, %v375
  %v377 = vand.u32 %v376, 4294901760
  %v378 = vsub.f32 %v376, %v377
  %v379 = vand.u32 %v378, 4294901760
  %380 = vmatmul.f32.gmra.mxu0 %v379
  %v381 = vpop.f32.mrf.mxu0
  %v382 = vadd.f32 %v59, %v381
  %v383 = vand.u32 %v141, 4294901760
  %v384 = vsub.f32 %v141, %v383
  %v385 = vand.u32 %v384, 4294901760
  %v386 = vsub.f32 %v384, %v385
  %v387 = vand.u32 %v386, 4294901760
  %388 = vmatmul.f32.gmra.mxu0 %v387
  %v389 = vpop.f32.mrf.mxu0
  %v390 = vadd.f32 %v59, %v389
  %v391 = vand.u32 %v144, 4294901760
  %v392 = vsub.f32 %v144, %v391
  %v393 = vand.u32 %v392, 4294901760
  %v394 = vsub.f32 %v392, %v393
  %v395 = vand.u32 %v394, 4294901760
  %396 = vmatmul.f32.gmra.mxu0 %v395
  %v397 = vpop.f32.mrf.mxu0
  %v398 = vadd.f32 %v59, %v397
  %v399 = vand.u32 %v147, 4294901760
  %v400 = vsub.f32 %v147, %v399
  %v401 = vand.u32 %v400, 4294901760
  %v402 = vsub.f32 %v400, %v401
  %v403 = vand.u32 %v402, 4294901760
  %404 = vmatmul.f32.gmra.mxu0 %v403
  %v405 = vpop.f32.mrf.mxu0
  %v406 = vadd.f32 %v59, %v405
  %v407 = vand.u32 %v150, 4294901760
  %v408 = vsub.f32 %v150, %v407
  %v409 = vand.u32 %v408, 4294901760
  %v410 = vsub.f32 %v408, %v409
  %v411 = vand.u32 %v410, 4294901760
  %412 = vmatmul.f32.gmra.mxu0 %v411
  %v413 = vpop.f32.mrf.mxu0
  %v414 = vadd.f32 %v59, %v413
  %v415 = vand.u32 %v153, 4294901760
  %v416 = vsub.f32 %v153, %v415
  %v417 = vand.u32 %v416, 4294901760
  %v418 = vsub.f32 %v416, %v417
  %v419 = vand.u32 %v418, 4294901760
  %420 = vmatmul.f32.gmra.mxu0 %v419
  %v421 = vpop.f32.mrf.mxu0
  %v422 = vadd.f32 %v59, %v421
  %v423 = vand.u32 %v156, 4294901760
  %v424 = vsub.f32 %v156, %v423
  %v425 = vand.u32 %v424, 4294901760
  %v426 = vsub.f32 %v424, %v425
  %v427 = vand.u32 %v426, 4294901760
  %428 = vmatmul.f32.gmra.mxu0 %v427
  %v429 = vpop.f32.mrf.mxu0
  %v430 = vadd.f32 %v59, %v429
  %431 = vdwg.mxu0
  %432 = vmatpush.msra.mxu0 0.0
  %433 = vmatpush.msra.mxu0 0.0
  %434 = vmatpush.msra.mxu0 0.0
  %435 = vmatpush.msra.mxu0 0.0
  %436 = vmatpush.msra.mxu0 0.0
  %437 = vmatpush.msra.mxu0 0.0
  %438 = vmatpush.msra.mxu0 0.0
  %439 = vmatpush.msra.mxu0 0.0
  %440 = vmatpush.msra.mxu0 0.0
  %441 = vmatpush.msra.mxu0 0.0
  %442 = vmatpush.msra.mxu0 0.0
  %443 = vmatpush.msra.mxu0 0.0
  %444 = vmatpush.msra.mxu0 0.0
  %445 = vmatpush.msra.mxu0 0.0
  %446 = vmatpush.msra.mxu0 0.0
  %v447 = vand.u32 %v22, 4294901760
  %v448 = vsub.f32 %v22, %v447
  %v449 = vand.u32 %v448, 4294901760
  %v450 = vsub.f32 %v448, %v449
  %v451 = vand.u32 %v450, 4294901760
  %452 = vmatpush.msra.mxu0 %v451
  %v453 = vand.u32 %v63, 4294901760
  %454 = vmatmul.f32.gmra.mxu0 %v453
  %v455 = vpop.f32.mrf.mxu0
  %v456 = vadd.f32 %v182, %v455
  %v457 = vand.u32 %v66, 4294901760
  %458 = vmatmul.f32.gmra.mxu0 %v457
  %v459 = vpop.f32.mrf.mxu0
  %v460 = vadd.f32 %v190, %v459
  %v461 = vand.u32 %v69, 4294901760
  %462 = vmatmul.f32.gmra.mxu0 %v461
  %v463 = vpop.f32.mrf.mxu0
  %v464 = vadd.f32 %v198, %v463
  %v465 = vand.u32 %v72, 4294901760
  %466 = vmatmul.f32.gmra.mxu0 %v465
  %v467 = vpop.f32.mrf.mxu0
  %v468 = vadd.f32 %v206, %v467
  %v469 = vand.u32 %v75, 4294901760
  %470 = vmatmul.f32.gmra.mxu0 %v469
  %v471 = vpop.f32.mrf.mxu0
  %v472 = vadd.f32 %v214, %v471
  %v473 = vand.u32 %v78, 4294901760
  %474 = vmatmul.f32.gmra.mxu0 %v473
  %v475 = vpop.f32.mrf.mxu0
  %v476 = vadd.f32 %v222, %v475
  %v477 = vand.u32 %v81, 4294901760
  %478 = vmatmul.f32.gmra.mxu0 %v477
  %v479 = vpop.f32.mrf.mxu0
  %v480 = vadd.f32 %v230, %v479
  %v481 = vand.u32 %v84, 4294901760
  %482 = vmatmul.f32.gmra.mxu0 %v481
  %v483 = vpop.f32.mrf.mxu0
  %v484 = vadd.f32 %v238, %v483
  %v485 = vand.u32 %v87, 4294901760
  %486 = vmatmul.f32.gmra.mxu0 %v485
  %v487 = vpop.f32.mrf.mxu0
  %v488 = vadd.f32 %v246, %v487
  %v489 = vand.u32 %v90, 4294901760
  %490 = vmatmul.f32.gmra.mxu0 %v489
  %v491 = vpop.f32.mrf.mxu0
  %v492 = vadd.f32 %v254, %v491
  %v493 = vand.u32 %v93, 4294901760
  %494 = vmatmul.f32.gmra.mxu0 %v493
  %v495 = vpop.f32.mrf.mxu0
  %v496 = vadd.f32 %v262, %v495
  %v497 = vand.u32 %v96, 4294901760
  %498 = vmatmul.f32.gmra.mxu0 %v497
  %v499 = vpop.f32.mrf.mxu0
  %v500 = vadd.f32 %v270, %v499
  %v501 = vand.u32 %v99, 4294901760
  %502 = vmatmul.f32.gmra.mxu0 %v501
  %v503 = vpop.f32.mrf.mxu0
  %v504 = vadd.f32 %v278, %v503
  %v505 = vand.u32 %v102, 4294901760
  %506 = vmatmul.f32.gmra.mxu0 %v505
  %v507 = vpop.f32.mrf.mxu0
  %v508 = vadd.f32 %v286, %v507
  %v509 = vand.u32 %v105, 4294901760
  %510 = vmatmul.f32.gmra.mxu0 %v509
  %v511 = vpop.f32.mrf.mxu0
  %v512 = vadd.f32 %v294, %v511
  %v513 = vand.u32 %v108, 4294901760
  %514 = vmatmul.f32.gmra.mxu0 %v513
  %v515 = vpop.f32.mrf.mxu0
  %v516 = vadd.f32 %v302, %v515
  %v517 = vand.u32 %v111, 4294901760
  %518 = vmatmul.f32.gmra.mxu0 %v517
  %v519 = vpop.f32.mrf.mxu0
  %v520 = vadd.f32 %v310, %v519
  %v521 = vand.u32 %v114, 4294901760
  %522 = vmatmul.f32.gmra.mxu0 %v521
  %v523 = vpop.f32.mrf.mxu0
  %v524 = vadd.f32 %v318, %v523
  %v525 = vand.u32 %v117, 4294901760
  %526 = vmatmul.f32.gmra.mxu0 %v525
  %v527 = vpop.f32.mrf.mxu0
  %v528 = vadd.f32 %v326, %v527
  %v529 = vand.u32 %v120, 4294901760
  %530 = vmatmul.f32.gmra.mxu0 %v529
  %v531 = vpop.f32.mrf.mxu0
  %v532 = vadd.f32 %v334, %v531
  %v533 = vand.u32 %v123, 4294901760
  %534 = vmatmul.f32.gmra.mxu0 %v533
  %v535 = vpop.f32.mrf.mxu0
  %v536 = vadd.f32 %v342, %v535
  %v537 = vand.u32 %v126, 4294901760
  %538 = vmatmul.f32.gmra.mxu0 %v537
  %v539 = vpop.f32.mrf.mxu0
  %v540 = vadd.f32 %v350, %v539
  %v541 = vand.u32 %v129, 4294901760
  %542 = vmatmul.f32.gmra.mxu0 %v541
  %v543 = vpop.f32.mrf.mxu0
  %v544 = vadd.f32 %v358, %v543
  %v545 = vand.u32 %v132, 4294901760
  %546 = vmatmul.f32.gmra.mxu0 %v545
  %v547 = vpop.f32.mrf.mxu0
  %v548 = vadd.f32 %v366, %v547
  %v549 = vand.u32 %v135, 4294901760
  %550 = vmatmul.f32.gmra.mxu0 %v549
  %v551 = vpop.f32.mrf.mxu0
  %v552 = vadd.f32 %v374, %v551
  %v553 = vand.u32 %v138, 4294901760
  %554 = vmatmul.f32.gmra.mxu0 %v553
  %v555 = vpop.f32.mrf.mxu0
  %v556 = vadd.f32 %v382, %v555
  %v557 = vand.u32 %v141, 4294901760
  %558 = vmatmul.f32.gmra.mxu0 %v557
  %v559 = vpop.f32.mrf.mxu0
  %v560 = vadd.f32 %v390, %v559
  %v561 = vand.u32 %v144, 4294901760
  %562 = vmatmul.f32.gmra.mxu0 %v561
  %v563 = vpop.f32.mrf.mxu0
  %v564 = vadd.f32 %v398, %v563
  %v565 = vand.u32 %v147, 4294901760
  %566 = vmatmul.f32.gmra.mxu0 %v565
  %v567 = vpop.f32.mrf.mxu0
  %v568 = vadd.f32 %v406, %v567
  %v569 = vand.u32 %v150, 4294901760
  %570 = vmatmul.f32.gmra.mxu0 %v569
  %v571 = vpop.f32.mrf.mxu0
  %v572 = vadd.f32 %v414, %v571
  %v573 = vand.u32 %v153, 4294901760
  %574 = vmatmul.f32.gmra.mxu0 %v573
  %v575 = vpop.f32.mrf.mxu0
  %v576 = vadd.f32 %v422, %v575
  %v577 = vand.u32 %v156, 4294901760
  %578 = vmatmul.f32.gmra.mxu0 %v577
  %v579 = vpop.f32.mrf.mxu0
  %v580 = vadd.f32 %v430, %v579
  %581 = vdwg.mxu0
  %582 = vmatpush.msra.mxu0 0.0
  %583 = vmatpush.msra.mxu0 0.0
  %584 = vmatpush.msra.mxu0 0.0
  %585 = vmatpush.msra.mxu0 0.0
  %586 = vmatpush.msra.mxu0 0.0
  %587 = vmatpush.msra.mxu0 0.0
  %588 = vmatpush.msra.mxu0 0.0
  %589 = vmatpush.msra.mxu0 0.0
  %590 = vmatpush.msra.mxu0 0.0
  %591 = vmatpush.msra.mxu0 0.0
  %592 = vmatpush.msra.mxu0 0.0
  %593 = vmatpush.msra.mxu0 0.0
  %594 = vmatpush.msra.mxu0 0.0
  %595 = vmatpush.msra.mxu0 0.0
  %596 = vmatpush.msra.mxu0 0.0
  %v597 = vand.u32 %v22, 4294901760
  %v598 = vsub.f32 %v22, %v597
  %599 = vmatpush.msra.mxu0 %v598
  %v600 = vand.u32 %v63, 4294901760
  %v601 = vsub.f32 %v63, %v600
  %602 = vmatmul.f32.gmra.mxu0 %v601
  %v603 = vpop.f32.mrf.mxu0
  %v604 = vadd.f32 %v456, %v603
  %v605 = vand.u32 %v66, 4294901760
  %v606 = vsub.f32 %v66, %v605
  %607 = vmatmul.f32.gmra.mxu0 %v606
  %v608 = vpop.f32.mrf.mxu0
  %v609 = vadd.f32 %v460, %v608
  %v610 = vand.u32 %v69, 4294901760
  %v611 = vsub.f32 %v69, %v610
  %612 = vmatmul.f32.gmra.mxu0 %v611
  %v613 = vpop.f32.mrf.mxu0
  %v614 = vadd.f32 %v464, %v613
  %v615 = vand.u32 %v72, 4294901760
  %v616 = vsub.f32 %v72, %v615
  %617 = vmatmul.f32.gmra.mxu0 %v616
  %v618 = vpop.f32.mrf.mxu0
  %v619 = vadd.f32 %v468, %v618
  %v620 = vand.u32 %v75, 4294901760
  %v621 = vsub.f32 %v75, %v620
  %622 = vmatmul.f32.gmra.mxu0 %v621
  %v623 = vpop.f32.mrf.mxu0
  %v624 = vadd.f32 %v472, %v623
  %v625 = vand.u32 %v78, 4294901760
  %v626 = vsub.f32 %v78, %v625
  %627 = vmatmul.f32.gmra.mxu0 %v626
  %v628 = vpop.f32.mrf.mxu0
  %v629 = vadd.f32 %v476, %v628
  %v630 = vand.u32 %v81, 4294901760
  %v631 = vsub.f32 %v81, %v630
  %632 = vmatmul.f32.gmra.mxu0 %v631
  %v633 = vpop.f32.mrf.mxu0
  %v634 = vadd.f32 %v480, %v633
  %v635 = vand.u32 %v84, 4294901760
  %v636 = vsub.f32 %v84, %v635
  %637 = vmatmul.f32.gmra.mxu0 %v636
  %v638 = vpop.f32.mrf.mxu0
  %v639 = vadd.f32 %v484, %v638
  %v640 = vand.u32 %v87, 4294901760
  %v641 = vsub.f32 %v87, %v640
  %642 = vmatmul.f32.gmra.mxu0 %v641
  %v643 = vpop.f32.mrf.mxu0
  %v644 = vadd.f32 %v488, %v643
  %v645 = vand.u32 %v90, 4294901760
  %v646 = vsub.f32 %v90, %v645
  %647 = vmatmul.f32.gmra.mxu0 %v646
  %v648 = vpop.f32.mrf.mxu0
  %v649 = vadd.f32 %v492, %v648
  %v650 = vand.u32 %v93, 4294901760
  %v651 = vsub.f32 %v93, %v650
  %652 = vmatmul.f32.gmra.mxu0 %v651
  %v653 = vpop.f32.mrf.mxu0
  %v654 = vadd.f32 %v496, %v653
  %v655 = vand.u32 %v96, 4294901760
  %v656 = vsub.f32 %v96, %v655
  %657 = vmatmul.f32.gmra.mxu0 %v656
  %v658 = vpop.f32.mrf.mxu0
  %v659 = vadd.f32 %v500, %v658
  %v660 = vand.u32 %v99, 4294901760
  %v661 = vsub.f32 %v99, %v660
  %662 = vmatmul.f32.gmra.mxu0 %v661
  %v663 = vpop.f32.mrf.mxu0
  %v664 = vadd.f32 %v504, %v663
  %v665 = vand.u32 %v102, 4294901760
  %v666 = vsub.f32 %v102, %v665
  %667 = vmatmul.f32.gmra.mxu0 %v666
  %v668 = vpop.f32.mrf.mxu0
  %v669 = vadd.f32 %v508, %v668
  %v670 = vand.u32 %v105, 4294901760
  %v671 = vsub.f32 %v105, %v670
  %672 = vmatmul.f32.gmra.mxu0 %v671
  %v673 = vpop.f32.mrf.mxu0
  %v674 = vadd.f32 %v512, %v673
  %v675 = vand.u32 %v108, 4294901760
  %v676 = vsub.f32 %v108, %v675
  %677 = vmatmul.f32.gmra.mxu0 %v676
  %v678 = vpop.f32.mrf.mxu0
  %v679 = vadd.f32 %v516, %v678
  %v680 = vand.u32 %v111, 4294901760
  %v681 = vsub.f32 %v111, %v680
  %682 = vmatmul.f32.gmra.mxu0 %v681
  %v683 = vpop.f32.mrf.mxu0
  %v684 = vadd.f32 %v520, %v683
  %v685 = vand.u32 %v114, 4294901760
  %v686 = vsub.f32 %v114, %v685
  %687 = vmatmul.f32.gmra.mxu0 %v686
  %v688 = vpop.f32.mrf.mxu0
  %v689 = vadd.f32 %v524, %v688
  %v690 = vand.u32 %v117, 4294901760
  %v691 = vsub.f32 %v117, %v690
  %692 = vmatmul.f32.gmra.mxu0 %v691
  %v693 = vpop.f32.mrf.mxu0
  %v694 = vadd.f32 %v528, %v693
  %v695 = vand.u32 %v120, 4294901760
  %v696 = vsub.f32 %v120, %v695
  %697 = vmatmul.f32.gmra.mxu0 %v696
  %v698 = vpop.f32.mrf.mxu0
  %v699 = vadd.f32 %v532, %v698
  %v700 = vand.u32 %v123, 4294901760
  %v701 = vsub.f32 %v123, %v700
  %702 = vmatmul.f32.gmra.mxu0 %v701
  %v703 = vpop.f32.mrf.mxu0
  %v704 = vadd.f32 %v536, %v703
  %v705 = vand.u32 %v126, 4294901760
  %v706 = vsub.f32 %v126, %v705
  %707 = vmatmul.f32.gmra.mxu0 %v706
  %v708 = vpop.f32.mrf.mxu0
  %v709 = vadd.f32 %v540, %v708
  %v710 = vand.u32 %v129, 4294901760
  %v711 = vsub.f32 %v129, %v710
  %712 = vmatmul.f32.gmra.mxu0 %v711
  %v713 = vpop.f32.mrf.mxu0
  %v714 = vadd.f32 %v544, %v713
  %v715 = vand.u32 %v132, 4294901760
  %v716 = vsub.f32 %v132, %v715
  %717 = vmatmul.f32.gmra.mxu0 %v716
  %v718 = vpop.f32.mrf.mxu0
  %v719 = vadd.f32 %v548, %v718
  %v720 = vand.u32 %v135, 4294901760
  %v721 = vsub.f32 %v135, %v720
  %722 = vmatmul.f32.gmra.mxu0 %v721
  %v723 = vpop.f32.mrf.mxu0
  %v724 = vadd.f32 %v552, %v723
  %v725 = vand.u32 %v138, 4294901760
  %v726 = vsub.f32 %v138, %v725
  %727 = vmatmul.f32.gmra.mxu0 %v726
  %v728 = vpop.f32.mrf.mxu0
  %v729 = vadd.f32 %v556, %v728
  %v730 = vand.u32 %v141, 4294901760
  %v731 = vsub.f32 %v141, %v730
  %732 = vmatmul.f32.gmra.mxu0 %v731
  %v733 = vpop.f32.mrf.mxu0
  %v734 = vadd.f32 %v560, %v733
  %v735 = vand.u32 %v144, 4294901760
  %v736 = vsub.f32 %v144, %v735
  %737 = vmatmul.f32.gmra.mxu0 %v736
  %v738 = vpop.f32.mrf.mxu0
  %v739 = vadd.f32 %v564, %v738
  %v740 = vand.u32 %v147, 4294901760
  %v741 = vsub.f32 %v147, %v740
  %742 = vmatmul.f32.gmra.mxu0 %v741
  %v743 = vpop.f32.mrf.mxu0
  %v744 = vadd.f32 %v568, %v743
  %v745 = vand.u32 %v150, 4294901760
  %v746 = vsub.f32 %v150, %v745
  %747 = vmatmul.f32.gmra.mxu0 %v746
  %v748 = vpop.f32.mrf.mxu0
  %v749 = vadd.f32 %v572, %v748
  %v750 = vand.u32 %v153, 4294901760
  %v751 = vsub.f32 %v153, %v750
  %752 = vmatmul.f32.gmra.mxu0 %v751
  %v753 = vpop.f32.mrf.mxu0
  %v754 = vadd.f32 %v576, %v753
  %v755 = vand.u32 %v156, 4294901760
  %v756 = vsub.f32 %v156, %v755
  %757 = vmatmul.f32.gmra.mxu0 %v756
  %v758 = vpop.f32.mrf.mxu0
  %v759 = vadd.f32 %v580, %v758
  %760 = vdwg.mxu0
  %761 = vmatpush.msra.mxu0 0.0
  %762 = vmatpush.msra.mxu0 0.0
  %763 = vmatpush.msra.mxu0 0.0
  %764 = vmatpush.msra.mxu0 0.0
  %765 = vmatpush.msra.mxu0 0.0
  %766 = vmatpush.msra.mxu0 0.0
  %767 = vmatpush.msra.mxu0 0.0
  %768 = vmatpush.msra.mxu0 0.0
  %769 = vmatpush.msra.mxu0 0.0
  %770 = vmatpush.msra.mxu0 0.0
  %771 = vmatpush.msra.mxu0 0.0
  %772 = vmatpush.msra.mxu0 0.0
  %773 = vmatpush.msra.mxu0 0.0
  %774 = vmatpush.msra.mxu0 0.0
  %775 = vmatpush.msra.mxu0 0.0
  %v776 = vand.u32 %v22, 4294901760
  %777 = vmatpush.msra.mxu0 %v776
  %v778 = vand.u32 %v63, 4294901760
  %v779 = vsub.f32 %v63, %v778
  %v780 = vand.u32 %v779, 4294901760
  %781 = vmatmul.f32.gmra.mxu0 %v780
  %v782 = vpop.f32.mrf.mxu0
  %v783 = vadd.f32 %v604, %v782
  %v784 = vand.u32 %v66, 4294901760
  %v785 = vsub.f32 %v66, %v784
  %v786 = vand.u32 %v785, 4294901760
  %787 = vmatmul.f32.gmra.mxu0 %v786
  %v788 = vpop.f32.mrf.mxu0
  %v789 = vadd.f32 %v609, %v788
  %v790 = vand.u32 %v69, 4294901760
  %v791 = vsub.f32 %v69, %v790
  %v792 = vand.u32 %v791, 4294901760
  %793 = vmatmul.f32.gmra.mxu0 %v792
  %v794 = vpop.f32.mrf.mxu0
  %v795 = vadd.f32 %v614, %v794
  %v796 = vand.u32 %v72, 4294901760
  %v797 = vsub.f32 %v72, %v796
  %v798 = vand.u32 %v797, 4294901760
  %799 = vmatmul.f32.gmra.mxu0 %v798
  %v800 = vpop.f32.mrf.mxu0
  %v801 = vadd.f32 %v619, %v800
  %v802 = vand.u32 %v75, 4294901760
  %v803 = vsub.f32 %v75, %v802
  %v804 = vand.u32 %v803, 4294901760
  %805 = vmatmul.f32.gmra.mxu0 %v804
  %v806 = vpop.f32.mrf.mxu0
  %v807 = vadd.f32 %v624, %v806
  %v808 = vand.u32 %v78, 4294901760
  %v809 = vsub.f32 %v78, %v808
  %v810 = vand.u32 %v809, 4294901760
  %811 = vmatmul.f32.gmra.mxu0 %v810
  %v812 = vpop.f32.mrf.mxu0
  %v813 = vadd.f32 %v629, %v812
  %v814 = vand.u32 %v81, 4294901760
  %v815 = vsub.f32 %v81, %v814
  %v816 = vand.u32 %v815, 4294901760
  %817 = vmatmul.f32.gmra.mxu0 %v816
  %v818 = vpop.f32.mrf.mxu0
  %v819 = vadd.f32 %v634, %v818
  %v820 = vand.u32 %v84, 4294901760
  %v821 = vsub.f32 %v84, %v820
  %v822 = vand.u32 %v821, 4294901760
  %823 = vmatmul.f32.gmra.mxu0 %v822
  %v824 = vpop.f32.mrf.mxu0
  %v825 = vadd.f32 %v639, %v824
  %v826 = vand.u32 %v87, 4294901760
  %v827 = vsub.f32 %v87, %v826
  %v828 = vand.u32 %v827, 4294901760
  %829 = vmatmul.f32.gmra.mxu0 %v828
  %v830 = vpop.f32.mrf.mxu0
  %v831 = vadd.f32 %v644, %v830
  %v832 = vand.u32 %v90, 4294901760
  %v833 = vsub.f32 %v90, %v832
  %v834 = vand.u32 %v833, 4294901760
  %835 = vmatmul.f32.gmra.mxu0 %v834
  %v836 = vpop.f32.mrf.mxu0
  %v837 = vadd.f32 %v649, %v836
  %v838 = vand.u32 %v93, 4294901760
  %v839 = vsub.f32 %v93, %v838
  %v840 = vand.u32 %v839, 4294901760
  %841 = vmatmul.f32.gmra.mxu0 %v840
  %v842 = vpop.f32.mrf.mxu0
  %v843 = vadd.f32 %v654, %v842
  %v844 = vand.u32 %v96, 4294901760
  %v845 = vsub.f32 %v96, %v844
  %v846 = vand.u32 %v845, 4294901760
  %847 = vmatmul.f32.gmra.mxu0 %v846
  %v848 = vpop.f32.mrf.mxu0
  %v849 = vadd.f32 %v659, %v848
  %v850 = vand.u32 %v99, 4294901760
  %v851 = vsub.f32 %v99, %v850
  %v852 = vand.u32 %v851, 4294901760
  %853 = vmatmul.f32.gmra.mxu0 %v852
  %v854 = vpop.f32.mrf.mxu0
  %v855 = vadd.f32 %v664, %v854
  %v856 = vand.u32 %v102, 4294901760
  %v857 = vsub.f32 %v102, %v856
  %v858 = vand.u32 %v857, 4294901760
  %859 = vmatmul.f32.gmra.mxu0 %v858
  %v860 = vpop.f32.mrf.mxu0
  %v861 = vadd.f32 %v669, %v860
  %v862 = vand.u32 %v105, 4294901760
  %v863 = vsub.f32 %v105, %v862
  %v864 = vand.u32 %v863, 4294901760
  %865 = vmatmul.f32.gmra.mxu0 %v864
  %v866 = vpop.f32.mrf.mxu0
  %v867 = vadd.f32 %v674, %v866
  %v868 = vand.u32 %v108, 4294901760
  %v869 = vsub.f32 %v108, %v868
  %v870 = vand.u32 %v869, 4294901760
  %871 = vmatmul.f32.gmra.mxu0 %v870
  %v872 = vpop.f32.mrf.mxu0
  %v873 = vadd.f32 %v679, %v872
  %v874 = vand.u32 %v111, 4294901760
  %v875 = vsub.f32 %v111, %v874
  %v876 = vand.u32 %v875, 4294901760
  %877 = vmatmul.f32.gmra.mxu0 %v876
  %v878 = vpop.f32.mrf.mxu0
  %v879 = vadd.f32 %v684, %v878
  %v880 = vand.u32 %v114, 4294901760
  %v881 = vsub.f32 %v114, %v880
  %v882 = vand.u32 %v881, 4294901760
  %883 = vmatmul.f32.gmra.mxu0 %v882
  %v884 = vpop.f32.mrf.mxu0
  %v885 = vadd.f32 %v689, %v884
  %v886 = vand.u32 %v117, 4294901760
  %v887 = vsub.f32 %v117, %v886
  %v888 = vand.u32 %v887, 4294901760
  %889 = vmatmul.f32.gmra.mxu0 %v888
  %v890 = vpop.f32.mrf.mxu0
  %v891 = vadd.f32 %v694, %v890
  %v892 = vand.u32 %v120, 4294901760
  %v893 = vsub.f32 %v120, %v892
  %v894 = vand.u32 %v893, 4294901760
  %895 = vmatmul.f32.gmra.mxu0 %v894
  %v896 = vpop.f32.mrf.mxu0
  %v897 = vadd.f32 %v699, %v896
  %v898 = vand.u32 %v123, 4294901760
  %v899 = vsub.f32 %v123, %v898
  %v900 = vand.u32 %v899, 4294901760
  %901 = vmatmul.f32.gmra.mxu0 %v900
  %v902 = vpop.f32.mrf.mxu0
  %v903 = vadd.f32 %v704, %v902
  %v904 = vand.u32 %v126, 4294901760
  %v905 = vsub.f32 %v126, %v904
  %v906 = vand.u32 %v905, 4294901760
  %907 = vmatmul.f32.gmra.mxu0 %v906
  %v908 = vpop.f32.mrf.mxu0
  %v909 = vadd.f32 %v709, %v908
  %v910 = vand.u32 %v129, 4294901760
  %v911 = vsub.f32 %v129, %v910
  %v912 = vand.u32 %v911, 4294901760
  %913 = vmatmul.f32.gmra.mxu0 %v912
  %v914 = vpop.f32.mrf.mxu0
  %v915 = vadd.f32 %v714, %v914
  %v916 = vand.u32 %v132, 4294901760
  %v917 = vsub.f32 %v132, %v916
  %v918 = vand.u32 %v917, 4294901760
  %919 = vmatmul.f32.gmra.mxu0 %v918
  %v920 = vpop.f32.mrf.mxu0
  %v921 = vadd.f32 %v719, %v920
  %v922 = vand.u32 %v135, 4294901760
  %v923 = vsub.f32 %v135, %v922
  %v924 = vand.u32 %v923, 4294901760
  %925 = vmatmul.f32.gmra.mxu0 %v924
  %v926 = vpop.f32.mrf.mxu0
  %v927 = vadd.f32 %v724, %v926
  %v928 = vand.u32 %v138, 4294901760
  %v929 = vsub.f32 %v138, %v928
  %v930 = vand.u32 %v929, 4294901760
  %931 = vmatmul.f32.gmra.mxu0 %v930
  %v932 = vpop.f32.mrf.mxu0
  %v933 = vadd.f32 %v729, %v932
  %v934 = vand.u32 %v141, 4294901760
  %v935 = vsub.f32 %v141, %v934
  %v936 = vand.u32 %v935, 4294901760
  %937 = vmatmul.f32.gmra.mxu0 %v936
  %v938 = vpop.f32.mrf.mxu0
  %v939 = vadd.f32 %v734, %v938
  %v940 = vand.u32 %v144, 4294901760
  %v941 = vsub.f32 %v144, %v940
  %v942 = vand.u32 %v941, 4294901760
  %943 = vmatmul.f32.gmra.mxu0 %v942
  %v944 = vpop.f32.mrf.mxu0
  %v945 = vadd.f32 %v739, %v944
  %v946 = vand.u32 %v147, 4294901760
  %v947 = vsub.f32 %v147, %v946
  %v948 = vand.u32 %v947, 4294901760
  %949 = vmatmul.f32.gmra.mxu0 %v948
  %v950 = vpop.f32.mrf.mxu0
  %v951 = vadd.f32 %v744, %v950
  %v952 = vand.u32 %v150, 4294901760
  %v953 = vsub.f32 %v150, %v952
  %v954 = vand.u32 %v953, 4294901760
  %955 = vmatmul.f32.gmra.mxu0 %v954
  %v956 = vpop.f32.mrf.mxu0
  %v957 = vadd.f32 %v749, %v956
  %v958 = vand.u32 %v153, 4294901760
  %v959 = vsub.f32 %v153, %v958
  %v960 = vand.u32 %v959, 4294901760
  %961 = vmatmul.f32.gmra.mxu0 %v960
  %v962 = vpop.f32.mrf.mxu0
  %v963 = vadd.f32 %v754, %v962
  %v964 = vand.u32 %v156, 4294901760
  %v965 = vsub.f32 %v156, %v964
  %v966 = vand.u32 %v965, 4294901760
  %967 = vmatmul.f32.gmra.mxu0 %v966
  %v968 = vpop.f32.mrf.mxu0
  %v969 = vadd.f32 %v759, %v968
  %970 = vdwg.mxu0
  %971 = vmatpush.msra.mxu0 0.0
  %972 = vmatpush.msra.mxu0 0.0
  %973 = vmatpush.msra.mxu0 0.0
  %974 = vmatpush.msra.mxu0 0.0
  %975 = vmatpush.msra.mxu0 0.0
  %976 = vmatpush.msra.mxu0 0.0
  %977 = vmatpush.msra.mxu0 0.0
  %978 = vmatpush.msra.mxu0 0.0
  %979 = vmatpush.msra.mxu0 0.0
  %980 = vmatpush.msra.mxu0 0.0
  %981 = vmatpush.msra.mxu0 0.0
  %982 = vmatpush.msra.mxu0 0.0
  %983 = vmatpush.msra.mxu0 0.0
  %984 = vmatpush.msra.mxu0 0.0
  %985 = vmatpush.msra.mxu0 0.0
  %v986 = vand.u32 %v22, 4294901760
  %v987 = vsub.f32 %v22, %v986
  %v988 = vand.u32 %v987, 4294901760
  %989 = vmatpush.msra.mxu0 %v988
  %v990 = vand.u32 %v63, 4294901760
  %991 = vmatmul.f32.gmra.mxu0 %v990
  %v992 = vpop.f32.mrf.mxu0
  %v993 = vadd.f32 %v783, %v992
  %v994 = vand.u32 %v66, 4294901760
  %995 = vmatmul.f32.gmra.mxu0 %v994
  %v996 = vpop.f32.mrf.mxu0
  %v997 = vadd.f32 %v789, %v996
  %v998 = vand.u32 %v69, 4294901760
  %999 = vmatmul.f32.gmra.mxu0 %v998
  %v1000 = vpop.f32.mrf.mxu0
  %v1001 = vadd.f32 %v795, %v1000
  %v1002 = vand.u32 %v72, 4294901760
  %1003 = vmatmul.f32.gmra.mxu0 %v1002
  %v1004 = vpop.f32.mrf.mxu0
  %v1005 = vadd.f32 %v801, %v1004
  %v1006 = vand.u32 %v75, 4294901760
  %1007 = vmatmul.f32.gmra.mxu0 %v1006
  %v1008 = vpop.f32.mrf.mxu0
  %v1009 = vadd.f32 %v807, %v1008
  %v1010 = vand.u32 %v78, 4294901760
  %1011 = vmatmul.f32.gmra.mxu0 %v1010
  %v1012 = vpop.f32.mrf.mxu0
  %v1013 = vadd.f32 %v813, %v1012
  %v1014 = vand.u32 %v81, 4294901760
  %1015 = vmatmul.f32.gmra.mxu0 %v1014
  %v1016 = vpop.f32.mrf.mxu0
  %v1017 = vadd.f32 %v819, %v1016
  %v1018 = vand.u32 %v84, 4294901760
  %1019 = vmatmul.f32.gmra.mxu0 %v1018
  %v1020 = vpop.f32.mrf.mxu0
  %v1021 = vadd.f32 %v825, %v1020
  %v1022 = vand.u32 %v87, 4294901760
  %1023 = vmatmul.f32.gmra.mxu0 %v1022
  %v1024 = vpop.f32.mrf.mxu0
  %v1025 = vadd.f32 %v831, %v1024
  %v1026 = vand.u32 %v90, 4294901760
  %1027 = vmatmul.f32.gmra.mxu0 %v1026
  %v1028 = vpop.f32.mrf.mxu0
  %v1029 = vadd.f32 %v837, %v1028
  %v1030 = vand.u32 %v93, 4294901760
  %1031 = vmatmul.f32.gmra.mxu0 %v1030
  %v1032 = vpop.f32.mrf.mxu0
  %v1033 = vadd.f32 %v843, %v1032
  %v1034 = vand.u32 %v96, 4294901760
  %1035 = vmatmul.f32.gmra.mxu0 %v1034
  %v1036 = vpop.f32.mrf.mxu0
  %v1037 = vadd.f32 %v849, %v1036
  %v1038 = vand.u32 %v99, 4294901760
  %1039 = vmatmul.f32.gmra.mxu0 %v1038
  %v1040 = vpop.f32.mrf.mxu0
  %v1041 = vadd.f32 %v855, %v1040
  %v1042 = vand.u32 %v102, 4294901760
  %1043 = vmatmul.f32.gmra.mxu0 %v1042
  %v1044 = vpop.f32.mrf.mxu0
  %v1045 = vadd.f32 %v861, %v1044
  %v1046 = vand.u32 %v105, 4294901760
  %1047 = vmatmul.f32.gmra.mxu0 %v1046
  %v1048 = vpop.f32.mrf.mxu0
  %v1049 = vadd.f32 %v867, %v1048
  %v1050 = vand.u32 %v108, 4294901760
  %1051 = vmatmul.f32.gmra.mxu0 %v1050
  %v1052 = vpop.f32.mrf.mxu0
  %v1053 = vadd.f32 %v873, %v1052
  %v1054 = vand.u32 %v111, 4294901760
  %1055 = vmatmul.f32.gmra.mxu0 %v1054
  %v1056 = vpop.f32.mrf.mxu0
  %v1057 = vadd.f32 %v879, %v1056
  %v1058 = vand.u32 %v114, 4294901760
  %1059 = vmatmul.f32.gmra.mxu0 %v1058
  %v1060 = vpop.f32.mrf.mxu0
  %v1061 = vadd.f32 %v885, %v1060
  %v1062 = vand.u32 %v117, 4294901760
  %1063 = vmatmul.f32.gmra.mxu0 %v1062
  %v1064 = vpop.f32.mrf.mxu0
  %v1065 = vadd.f32 %v891, %v1064
  %v1066 = vand.u32 %v120, 4294901760
  %1067 = vmatmul.f32.gmra.mxu0 %v1066
  %v1068 = vpop.f32.mrf.mxu0
  %v1069 = vadd.f32 %v897, %v1068
  %v1070 = vand.u32 %v123, 4294901760
  %1071 = vmatmul.f32.gmra.mxu0 %v1070
  %v1072 = vpop.f32.mrf.mxu0
  %v1073 = vadd.f32 %v903, %v1072
  %v1074 = vand.u32 %v126, 4294901760
  %1075 = vmatmul.f32.gmra.mxu0 %v1074
  %v1076 = vpop.f32.mrf.mxu0
  %v1077 = vadd.f32 %v909, %v1076
  %v1078 = vand.u32 %v129, 4294901760
  %1079 = vmatmul.f32.gmra.mxu0 %v1078
  %v1080 = vpop.f32.mrf.mxu0
  %v1081 = vadd.f32 %v915, %v1080
  %v1082 = vand.u32 %v132, 4294901760
  %1083 = vmatmul.f32.gmra.mxu0 %v1082
  %v1084 = vpop.f32.mrf.mxu0
  %v1085 = vadd.f32 %v921, %v1084
  %v1086 = vand.u32 %v135, 4294901760
  %1087 = vmatmul.f32.gmra.mxu0 %v1086
  %v1088 = vpop.f32.mrf.mxu0
  %v1089 = vadd.f32 %v927, %v1088
  %v1090 = vand.u32 %v138, 4294901760
  %1091 = vmatmul.f32.gmra.mxu0 %v1090
  %v1092 = vpop.f32.mrf.mxu0
  %v1093 = vadd.f32 %v933, %v1092
  %v1094 = vand.u32 %v141, 4294901760
  %1095 = vmatmul.f32.gmra.mxu0 %v1094
  %v1096 = vpop.f32.mrf.mxu0
  %v1097 = vadd.f32 %v939, %v1096
  %v1098 = vand.u32 %v144, 4294901760
  %1099 = vmatmul.f32.gmra.mxu0 %v1098
  %v1100 = vpop.f32.mrf.mxu0
  %v1101 = vadd.f32 %v945, %v1100
  %v1102 = vand.u32 %v147, 4294901760
  %1103 = vmatmul.f32.gmra.mxu0 %v1102
  %v1104 = vpop.f32.mrf.mxu0
  %v1105 = vadd.f32 %v951, %v1104
  %v1106 = vand.u32 %v150, 4294901760
  %1107 = vmatmul.f32.gmra.mxu0 %v1106
  %v1108 = vpop.f32.mrf.mxu0
  %v1109 = vadd.f32 %v957, %v1108
  %v1110 = vand.u32 %v153, 4294901760
  %1111 = vmatmul.f32.gmra.mxu0 %v1110
  %v1112 = vpop.f32.mrf.mxu0
  %v1113 = vadd.f32 %v963, %v1112
  %v1114 = vand.u32 %v156, 4294901760
  %1115 = vmatmul.f32.gmra.mxu0 %v1114
  %v1116 = vpop.f32.mrf.mxu0
  %v1117 = vadd.f32 %v969, %v1116
  %1118 = vdwg.mxu0
  %1119 = vmatpush.msra.mxu0 0.0
  %1120 = vmatpush.msra.mxu0 0.0
  %1121 = vmatpush.msra.mxu0 0.0
  %1122 = vmatpush.msra.mxu0 0.0
  %1123 = vmatpush.msra.mxu0 0.0
  %1124 = vmatpush.msra.mxu0 0.0
  %1125 = vmatpush.msra.mxu0 0.0
  %1126 = vmatpush.msra.mxu0 0.0
  %1127 = vmatpush.msra.mxu0 0.0
  %1128 = vmatpush.msra.mxu0 0.0
  %1129 = vmatpush.msra.mxu0 0.0
  %1130 = vmatpush.msra.mxu0 0.0
  %1131 = vmatpush.msra.mxu0 0.0
  %1132 = vmatpush.msra.mxu0 0.0
  %1133 = vmatpush.msra.mxu0 0.0
  %v1134 = vand.u32 %v22, 4294901760
  %1135 = vmatpush.msra.mxu0 %v1134
  %v1136 = vand.u32 %v63, 4294901760
  %1137 = vmatmul.f32.gmra.mxu0 %v1136
  %v1138 = vpop.f32.mrf.mxu0
  %v1139 = vadd.f32 %v993, %v1138
  %v1140 = vand.u32 %v66, 4294901760
  %1141 = vmatmul.f32.gmra.mxu0 %v1140
  %v1142 = vpop.f32.mrf.mxu0
  %v1143 = vadd.f32 %v997, %v1142
  %v1144 = vand.u32 %v69, 4294901760
  %1145 = vmatmul.f32.gmra.mxu0 %v1144
  %v1146 = vpop.f32.mrf.mxu0
  %v1147 = vadd.f32 %v1001, %v1146
  %v1148 = vand.u32 %v72, 4294901760
  %1149 = vmatmul.f32.gmra.mxu0 %v1148
  %v1150 = vpop.f32.mrf.mxu0
  %v1151 = vadd.f32 %v1005, %v1150
  %v1152 = vand.u32 %v75, 4294901760
  %1153 = vmatmul.f32.gmra.mxu0 %v1152
  %v1154 = vpop.f32.mrf.mxu0
  %v1155 = vadd.f32 %v1009, %v1154
  %v1156 = vand.u32 %v78, 4294901760
  %1157 = vmatmul.f32.gmra.mxu0 %v1156
  %v1158 = vpop.f32.mrf.mxu0
  %v1159 = vadd.f32 %v1013, %v1158
  %v1160 = vand.u32 %v81, 4294901760
  %1161 = vmatmul.f32.gmra.mxu0 %v1160
  %v1162 = vpop.f32.mrf.mxu0
  %v1163 = vadd.f32 %v1017, %v1162
  %v1164 = vand.u32 %v84, 4294901760
  %1165 = vmatmul.f32.gmra.mxu0 %v1164
  %v1166 = vpop.f32.mrf.mxu0
  %v1167 = vadd.f32 %v1021, %v1166
  %v1168 = vand.u32 %v87, 4294901760
  %1169 = vmatmul.f32.gmra.mxu0 %v1168
  %v1170 = vpop.f32.mrf.mxu0
  %v1171 = vadd.f32 %v1025, %v1170
  %v1172 = vand.u32 %v90, 4294901760
  %1173 = vmatmul.f32.gmra.mxu0 %v1172
  %v1174 = vpop.f32.mrf.mxu0
  %v1175 = vadd.f32 %v1029, %v1174
  %v1176 = vand.u32 %v93, 4294901760
  %1177 = vmatmul.f32.gmra.mxu0 %v1176
  %v1178 = vpop.f32.mrf.mxu0
  %v1179 = vadd.f32 %v1033, %v1178
  %v1180 = vand.u32 %v96, 4294901760
  %1181 = vmatmul.f32.gmra.mxu0 %v1180
  %v1182 = vpop.f32.mrf.mxu0
  %v1183 = vadd.f32 %v1037, %v1182
  %v1184 = vand.u32 %v99, 4294901760
  %1185 = vmatmul.f32.gmra.mxu0 %v1184
  %v1186 = vpop.f32.mrf.mxu0
  %v1187 = vadd.f32 %v1041, %v1186
  %v1188 = vand.u32 %v102, 4294901760
  %1189 = vmatmul.f32.gmra.mxu0 %v1188
  %v1190 = vpop.f32.mrf.mxu0
  %v1191 = vadd.f32 %v1045, %v1190
  %v1192 = vand.u32 %v105, 4294901760
  %1193 = vmatmul.f32.gmra.mxu0 %v1192
  %v1194 = vpop.f32.mrf.mxu0
  %v1195 = vadd.f32 %v1049, %v1194
  %v1196 = vand.u32 %v108, 4294901760
  %1197 = vmatmul.f32.gmra.mxu0 %v1196
  %v1198 = vpop.f32.mrf.mxu0
  %v1199 = vadd.f32 %v1053, %v1198
  %v1200 = vand.u32 %v111, 4294901760
  %1201 = vmatmul.f32.gmra.mxu0 %v1200
  %v1202 = vpop.f32.mrf.mxu0
  %v1203 = vadd.f32 %v1057, %v1202
  %v1204 = vand.u32 %v114, 4294901760
  %1205 = vmatmul.f32.gmra.mxu0 %v1204
  %v1206 = vpop.f32.mrf.mxu0
  %v1207 = vadd.f32 %v1061, %v1206
  %v1208 = vand.u32 %v117, 4294901760
  %1209 = vmatmul.f32.gmra.mxu0 %v1208
  %v1210 = vpop.f32.mrf.mxu0
  %v1211 = vadd.f32 %v1065, %v1210
  %v1212 = vand.u32 %v120, 4294901760
  %1213 = vmatmul.f32.gmra.mxu0 %v1212
  %v1214 = vpop.f32.mrf.mxu0
  %v1215 = vadd.f32 %v1069, %v1214
  %v1216 = vand.u32 %v123, 4294901760
  %1217 = vmatmul.f32.gmra.mxu0 %v1216
  %v1218 = vpop.f32.mrf.mxu0
  %v1219 = vadd.f32 %v1073, %v1218
  %v1220 = vand.u32 %v126, 4294901760
  %1221 = vmatmul.f32.gmra.mxu0 %v1220
  %v1222 = vpop.f32.mrf.mxu0
  %v1223 = vadd.f32 %v1077, %v1222
  %v1224 = vand.u32 %v129, 4294901760
  %1225 = vmatmul.f32.gmra.mxu0 %v1224
  %v1226 = vpop.f32.mrf.mxu0
  %v1227 = vadd.f32 %v1081, %v1226
  %v1228 = vand.u32 %v132, 4294901760
  %1229 = vmatmul.f32.gmra.mxu0 %v1228
  %v1230 = vpop.f32.mrf.mxu0
  %v1231 = vadd.f32 %v1085, %v1230
  %v1232 = vand.u32 %v135, 4294901760
  %1233 = vmatmul.f32.gmra.mxu0 %v1232
  %v1234 = vpop.f32.mrf.mxu0
  %v1235 = vadd.f32 %v1089, %v1234
  %v1236 = vand.u32 %v138, 4294901760
  %1237 = vmatmul.f32.gmra.mxu0 %v1236
  %v1238 = vpop.f32.mrf.mxu0
  %v1239 = vadd.f32 %v1093, %v1238
  %v1240 = vand.u32 %v141, 4294901760
  %1241 = vmatmul.f32.gmra.mxu0 %v1240
  %v1242 = vpop.f32.mrf.mxu0
  %v1243 = vadd.f32 %v1097, %v1242
  %v1244 = vand.u32 %v144, 4294901760
  %1245 = vmatmul.f32.gmra.mxu0 %v1244
  %v1246 = vpop.f32.mrf.mxu0
  %v1247 = vadd.f32 %v1101, %v1246
  %v1248 = vand.u32 %v147, 4294901760
  %1249 = vmatmul.f32.gmra.mxu0 %v1248
  %v1250 = vpop.f32.mrf.mxu0
  %v1251 = vadd.f32 %v1105, %v1250
  %v1252 = vand.u32 %v150, 4294901760
  %1253 = vmatmul.f32.gmra.mxu0 %v1252
  %v1254 = vpop.f32.mrf.mxu0
  %v1255 = vadd.f32 %v1109, %v1254
  %v1256 = vand.u32 %v153, 4294901760
  %1257 = vmatmul.f32.gmra.mxu0 %v1256
  %v1258 = vpop.f32.mrf.mxu0
  %v1259 = vadd.f32 %v1113, %v1258
  %v1260 = vand.u32 %v156, 4294901760
  %1261 = vmatmul.f32.gmra.mxu0 %v1260
  %v1262 = vpop.f32.mrf.mxu0
  %v1263 = vadd.f32 %v1117, %v1262
  %1264 = vdwg.mxu0
  %v1265 = vmul.f32 %v1139, 0.01
  %v1266 = vmul.f32 %v1143, 0.01
  %v1267 = vmul.f32 %v1147, 0.01
  %v1268 = vmul.f32 %v1151, 0.01
  %v1269 = vmul.f32 %v1155, 0.01
  %v1270 = vmul.f32 %v1159, 0.01
  %v1271 = vmul.f32 %v1163, 0.01
  %v1272 = vmul.f32 %v1167, 0.01
  %v1273 = vmul.f32 %v1171, 0.01
  %v1274 = vmul.f32 %v1175, 0.01
  %v1275 = vmul.f32 %v1179, 0.01
  %v1276 = vmul.f32 %v1183, 0.01
  %v1277 = vmul.f32 %v1187, 0.01
  %v1278 = vmul.f32 %v1191, 0.01
  %v1279 = vmul.f32 %v1195, 0.01
  %v1280 = vmul.f32 %v1199, 0.01
  %v1281 = vmul.f32 %v1203, 0.01
  %v1282 = vmul.f32 %v1207, 0.01
  %v1283 = vmul.f32 %v1211, 0.01
  %v1284 = vmul.f32 %v1215, 0.01
  %v1285 = vmul.f32 %v1219, 0.01
  %v1286 = vmul.f32 %v1223, 0.01
  %v1287 = vmul.f32 %v1227, 0.01
  %v1288 = vmul.f32 %v1231, 0.01
  %v1289 = vmul.f32 %v1235, 0.01
  %v1290 = vmul.f32 %v1239, 0.01
  %v1291 = vmul.f32 %v1243, 0.01
  %v1292 = vmul.f32 %v1247, 0.01
  %v1293 = vmul.f32 %v1251, 0.01
  %v1294 = vmul.f32 %v1255, 0.01
  %v1295 = vmul.f32 %v1259, 0.01
  %v1296 = vmul.f32 %v1263, 0.01
  %v1297 = vmax.f32 %v1139, %v1265
  %v1298 = vmax.f32 %v1143, %v1266
  %v1299 = vmax.f32 %v1147, %v1267
  %v1300 = vmax.f32 %v1151, %v1268
  %v1301 = vmax.f32 %v1155, %v1269
  %v1302 = vmax.f32 %v1159, %v1270
  %v1303 = vmax.f32 %v1163, %v1271
  %v1304 = vmax.f32 %v1167, %v1272
  %v1305 = vmax.f32 %v1171, %v1273
  %v1306 = vmax.f32 %v1175, %v1274
  %v1307 = vmax.f32 %v1179, %v1275
  %v1308 = vmax.f32 %v1183, %v1276
  %v1309 = vmax.f32 %v1187, %v1277
  %v1310 = vmax.f32 %v1191, %v1278
  %v1311 = vmax.f32 %v1195, %v1279
  %v1312 = vmax.f32 %v1199, %v1280
  %v1313 = vmax.f32 %v1203, %v1281
  %v1314 = vmax.f32 %v1207, %v1282
  %v1315 = vmax.f32 %v1211, %v1283
  %v1316 = vmax.f32 %v1215, %v1284
  %v1317 = vmax.f32 %v1219, %v1285
  %v1318 = vmax.f32 %v1223, %v1286
  %v1319 = vmax.f32 %v1227, %v1287
  %v1320 = vmax.f32 %v1231, %v1288
  %v1321 = vmax.f32 %v1235, %v1289
  %v1322 = vmax.f32 %v1239, %v1290
  %v1323 = vmax.f32 %v1243, %v1291
  %v1324 = vmax.f32 %v1247, %v1292
  %v1325 = vmax.f32 %v1251, %v1293
  %v1326 = vmax.f32 %v1255, %v1294
  %v1327 = vmax.f32 %v1259, %v1295
  %v1328 = vmax.f32 %v1263, %v1296
  %v1330 = vperm.slane %v24, 0
  %v1332 = vmul.f32 %v1297, %v1330
  %v1333 = vmul.f32 %v1298, %v1330
  %v1334 = vmul.f32 %v1299, %v1330
  %v1335 = vmul.f32 %v1300, %v1330
  %v1336 = vmul.f32 %v1301, %v1330
  %v1337 = vmul.f32 %v1302, %v1330
  %v1338 = vmul.f32 %v1303, %v1330
  %v1339 = vmul.f32 %v1304, %v1330
  %v1340 = vmul.f32 %v1305, %v1330
  %v1341 = vmul.f32 %v1306, %v1330
  %v1342 = vmul.f32 %v1307, %v1330
  %v1343 = vmul.f32 %v1308, %v1330
  %v1344 = vmul.f32 %v1309, %v1330
  %v1345 = vmul.f32 %v1310, %v1330
  %v1346 = vmul.f32 %v1311, %v1330
  %v1347 = vmul.f32 %v1312, %v1330
  %v1348 = vmul.f32 %v1313, %v1330
  %v1349 = vmul.f32 %v1314, %v1330
  %v1350 = vmul.f32 %v1315, %v1330
  %v1351 = vmul.f32 %v1316, %v1330
  %v1352 = vmul.f32 %v1317, %v1330
  %v1353 = vmul.f32 %v1318, %v1330
  %v1354 = vmul.f32 %v1319, %v1330
  %v1355 = vmul.f32 %v1320, %v1330
  %v1356 = vmul.f32 %v1321, %v1330
  %v1357 = vmul.f32 %v1322, %v1330
  %v1358 = vmul.f32 %v1323, %v1330
  %v1359 = vmul.f32 %v1324, %v1330
  %v1360 = vmul.f32 %v1325, %v1330
  %v1361 = vmul.f32 %v1326, %v1330
  %v1362 = vmul.f32 %v1327, %v1330
  %v1363 = vmul.f32 %v1328, %v1330
  %vm1364 = vcmask 654336
  %v1365 = vsel %vm1364, %v1332, 0.0
  %1366 = vadd.xlane.f32.xlu0 %v1365
  %v1367 = vpop.xlane.xlu0 %1366
  %v1368 = vsel %vm1364, %v1333, 0.0
  %1369 = vadd.xlane.f32.xlu0 %v1368
  %v1370 = vpop.xlane.xlu0 %1369
  %v1371 = vsel %vm1364, %v1334, 0.0
  %1372 = vadd.xlane.f32.xlu0 %v1371
  %v1373 = vpop.xlane.xlu0 %1372
  %v1374 = vsel %vm1364, %v1335, 0.0
  %1375 = vadd.xlane.f32.xlu0 %v1374
  %v1376 = vpop.xlane.xlu0 %1375
  %v1377 = vsel %vm1364, %v1336, 0.0
  %1378 = vadd.xlane.f32.xlu0 %v1377
  %v1379 = vpop.xlane.xlu0 %1378
  %v1380 = vsel %vm1364, %v1337, 0.0
  %1381 = vadd.xlane.f32.xlu0 %v1380
  %v1382 = vpop.xlane.xlu0 %1381
  %v1383 = vsel %vm1364, %v1338, 0.0
  %1384 = vadd.xlane.f32.xlu0 %v1383
  %v1385 = vpop.xlane.xlu0 %1384
  %v1386 = vsel %vm1364, %v1339, 0.0
  %1387 = vadd.xlane.f32.xlu0 %v1386
  %v1388 = vpop.xlane.xlu0 %1387
  %v1389 = vsel %vm1364, %v1340, 0.0
  %1390 = vadd.xlane.f32.xlu0 %v1389
  %v1391 = vpop.xlane.xlu0 %1390
  %v1392 = vsel %vm1364, %v1341, 0.0
  %1393 = vadd.xlane.f32.xlu0 %v1392
  %v1394 = vpop.xlane.xlu0 %1393
  %v1395 = vsel %vm1364, %v1342, 0.0
  %1396 = vadd.xlane.f32.xlu0 %v1395
  %v1397 = vpop.xlane.xlu0 %1396
  %v1398 = vsel %vm1364, %v1343, 0.0
  %1399 = vadd.xlane.f32.xlu0 %v1398
  %v1400 = vpop.xlane.xlu0 %1399
  %v1401 = vsel %vm1364, %v1344, 0.0
  %1402 = vadd.xlane.f32.xlu0 %v1401
  %v1403 = vpop.xlane.xlu0 %1402
  %v1404 = vsel %vm1364, %v1345, 0.0
  %1405 = vadd.xlane.f32.xlu0 %v1404
  %v1406 = vpop.xlane.xlu0 %1405
  %v1407 = vsel %vm1364, %v1346, 0.0
  %1408 = vadd.xlane.f32.xlu0 %v1407
  %v1409 = vpop.xlane.xlu0 %1408
  %v1410 = vsel %vm1364, %v1347, 0.0
  %1411 = vadd.xlane.f32.xlu0 %v1410
  %v1412 = vpop.xlane.xlu0 %1411
  %v1413 = vsel %vm1364, %v1348, 0.0
  %1414 = vadd.xlane.f32.xlu0 %v1413
  %v1415 = vpop.xlane.xlu0 %1414
  %v1416 = vsel %vm1364, %v1349, 0.0
  %1417 = vadd.xlane.f32.xlu0 %v1416
  %v1418 = vpop.xlane.xlu0 %1417
  %v1419 = vsel %vm1364, %v1350, 0.0
  %1420 = vadd.xlane.f32.xlu0 %v1419
  %v1421 = vpop.xlane.xlu0 %1420
  %v1422 = vsel %vm1364, %v1351, 0.0
  %1423 = vadd.xlane.f32.xlu0 %v1422
  %v1424 = vpop.xlane.xlu0 %1423
  %v1425 = vsel %vm1364, %v1352, 0.0
  %1426 = vadd.xlane.f32.xlu0 %v1425
  %v1427 = vpop.xlane.xlu0 %1426
  %v1428 = vsel %vm1364, %v1353, 0.0
  %1429 = vadd.xlane.f32.xlu0 %v1428
  %v1430 = vpop.xlane.xlu0 %1429
  %v1431 = vsel %vm1364, %v1354, 0.0
  %1432 = vadd.xlane.f32.xlu0 %v1431
  %v1433 = vpop.xlane.xlu0 %1432
  %v1434 = vsel %vm1364, %v1355, 0.0
  %1435 = vadd.xlane.f32.xlu0 %v1434
  %v1436 = vpop.xlane.xlu0 %1435
  %v1437 = vsel %vm1364, %v1356, 0.0
  %1438 = vadd.xlane.f32.xlu0 %v1437
  %v1439 = vpop.xlane.xlu0 %1438
  %v1440 = vsel %vm1364, %v1357, 0.0
  %1441 = vadd.xlane.f32.xlu0 %v1440
  %v1442 = vpop.xlane.xlu0 %1441
  %v1443 = vsel %vm1364, %v1358, 0.0
  %1444 = vadd.xlane.f32.xlu0 %v1443
  %v1445 = vpop.xlane.xlu0 %1444
  %v1446 = vsel %vm1364, %v1359, 0.0
  %1447 = vadd.xlane.f32.xlu0 %v1446
  %v1448 = vpop.xlane.xlu0 %1447
  %v1449 = vsel %vm1364, %v1360, 0.0
  %1450 = vadd.xlane.f32.xlu0 %v1449
  %v1451 = vpop.xlane.xlu0 %1450
  %v1452 = vsel %vm1364, %v1361, 0.0
  %1453 = vadd.xlane.f32.xlu0 %v1452
  %v1454 = vpop.xlane.xlu0 %1453
  %v1455 = vsel %vm1364, %v1362, 0.0
  %1456 = vadd.xlane.f32.xlu0 %v1455
  %v1457 = vpop.xlane.xlu0 %1456
  %v1458 = vsel %vm1364, %v1363, 0.0
  %1459 = vadd.xlane.f32.xlu0 %v1458
  %v1460 = vpop.xlane.xlu0 %1459
  %v1462 = vperm.slane %v25, 0
  %v1464 = vadd.f32 %v1367, %v1462
  %v1465 = vadd.f32 %v1370, %v1462
  %v1466 = vadd.f32 %v1373, %v1462
  %v1467 = vadd.f32 %v1376, %v1462
  %v1468 = vadd.f32 %v1379, %v1462
  %v1469 = vadd.f32 %v1382, %v1462
  %v1470 = vadd.f32 %v1385, %v1462
  %v1471 = vadd.f32 %v1388, %v1462
  %v1472 = vadd.f32 %v1391, %v1462
  %v1473 = vadd.f32 %v1394, %v1462
  %v1474 = vadd.f32 %v1397, %v1462
  %v1475 = vadd.f32 %v1400, %v1462
  %v1476 = vadd.f32 %v1403, %v1462
  %v1477 = vadd.f32 %v1406, %v1462
  %v1478 = vadd.f32 %v1409, %v1462
  %v1479 = vadd.f32 %v1412, %v1462
  %v1480 = vadd.f32 %v1415, %v1462
  %v1481 = vadd.f32 %v1418, %v1462
  %v1482 = vadd.f32 %v1421, %v1462
  %v1483 = vadd.f32 %v1424, %v1462
  %v1484 = vadd.f32 %v1427, %v1462
  %v1485 = vadd.f32 %v1430, %v1462
  %v1486 = vadd.f32 %v1433, %v1462
  %v1487 = vadd.f32 %v1436, %v1462
  %v1488 = vadd.f32 %v1439, %v1462
  %v1489 = vadd.f32 %v1442, %v1462
  %v1490 = vadd.f32 %v1445, %v1462
  %v1491 = vadd.f32 %v1448, %v1462
  %v1492 = vadd.f32 %v1451, %v1462
  %v1493 = vadd.f32 %v1454, %v1462
  %v1494 = vadd.f32 %v1457, %v1462
  %v1495 = vadd.f32 %v1460, %v1462
  %vm1496 = vcmask 7168
  %1497 = vst.msk [vmem:[%s5] sm:$0xff] %vm1496, %v1464
  %1498 = vst.msk [vmem:[%s5 + $0x8] sm:$0xff] %vm1496, %v1465
  %1499 = vst.msk [vmem:[%s5 + $0x10] sm:$0xff] %vm1496, %v1466
  %1500 = vst.msk [vmem:[%s5 + $0x18] sm:$0xff] %vm1496, %v1467
  %1501 = vst.msk [vmem:[%s5 + $0x20] sm:$0xff] %vm1496, %v1468
  %1502 = vst.msk [vmem:[%s5 + $0x28] sm:$0xff] %vm1496, %v1469
  %1503 = vst.msk [vmem:[%s5 + $0x30] sm:$0xff] %vm1496, %v1470
  %1504 = vst.msk [vmem:[%s5 + $0x38] sm:$0xff] %vm1496, %v1471
  %1505 = vst.msk [vmem:[%s5 + $0x40] sm:$0xff] %vm1496, %v1472
  %1506 = vst.msk [vmem:[%s5 + $0x48] sm:$0xff] %vm1496, %v1473
  %1507 = vst.msk [vmem:[%s5 + $0x50] sm:$0xff] %vm1496, %v1474
  %1508 = vst.msk [vmem:[%s5 + $0x58] sm:$0xff] %vm1496, %v1475
  %1509 = vst.msk [vmem:[%s5 + $0x60] sm:$0xff] %vm1496, %v1476
  %1510 = vst.msk [vmem:[%s5 + $0x68] sm:$0xff] %vm1496, %v1477
  %1511 = vst.msk [vmem:[%s5 + $0x70] sm:$0xff] %vm1496, %v1478
  %1512 = vst.msk [vmem:[%s5 + $0x78] sm:$0xff] %vm1496, %v1479
  %1513 = vst.msk [vmem:[%s5 + $0x80] sm:$0xff] %vm1496, %v1480
  %1514 = vst.msk [vmem:[%s5 + $0x88] sm:$0xff] %vm1496, %v1481
  %1515 = vst.msk [vmem:[%s5 + $0x90] sm:$0xff] %vm1496, %v1482
  %1516 = vst.msk [vmem:[%s5 + $0x98] sm:$0xff] %vm1496, %v1483
  %1517 = vst.msk [vmem:[%s5 + $0xa0] sm:$0xff] %vm1496, %v1484
  %1518 = vst.msk [vmem:[%s5 + $0xa8] sm:$0xff] %vm1496, %v1485
  %1519 = vst.msk [vmem:[%s5 + $0xb0] sm:$0xff] %vm1496, %v1486
  %1520 = vst.msk [vmem:[%s5 + $0xb8] sm:$0xff] %vm1496, %v1487
  %1521 = vst.msk [vmem:[%s5 + $0xc0] sm:$0xff] %vm1496, %v1488
  %1522 = vst.msk [vmem:[%s5 + $0xc8] sm:$0xff] %vm1496, %v1489
  %1523 = vst.msk [vmem:[%s5 + $0xd0] sm:$0xff] %vm1496, %v1490
  %1524 = vst.msk [vmem:[%s5 + $0xd8] sm:$0xff] %vm1496, %v1491
  %1525 = vst.msk [vmem:[%s5 + $0xe0] sm:$0xff] %vm1496, %v1492
  %1526 = vst.msk [vmem:[%s5 + $0xe8] sm:$0xff] %vm1496, %v1493
  %1527 = vst.msk [vmem:[%s5 + $0xf0] sm:$0xff] %vm1496, %v1494
  %1528 = vst.msk [vmem:[%s5 + $0xf8] sm:$0xff] %vm1496, %v1495
  // Predicated region
  $region22: #{tpu_custom_call.1} parent=0 // pred_check
    _
  $region23: #{tpu_custom_call.1} parent=0 // pred_check_branch
    %1530 = sbr.rel (0) target = $region25
  $region24: #{tpu_custom_call.1} parent=0 // pred_region
    _
  $region25: #{tpu_custom_call.1} parent=0 // pred_fallthru
    _
  // Predicated region
  $region26: #{tpu_custom_call.1} parent=0 // pred_check
    _
  $region27: #{tpu_custom_call.1} parent=0 // pred_check_branch
    %1532 = sbr.rel (0) target = $region29
  $region28: #{tpu_custom_call.1} parent=0 // pred_region
    _
  $region29: #{tpu_custom_call.1} parent=0 // pred_fallthru
    _

</llo_original>
